<compile_context>
chip_gen: v5e
topology: v5e:2x2
jax: 0.10.0
libtpu: 0.0.40
codegen_flags: <defaults>
</compile_context>

<pallas_src>
import jax
import jax.numpy as jnp
from jax.experimental import pallas as pl
from jax.experimental.pallas import tpu as pltpu

F_IN, F_HID, F_OUT = 10, 32, 5   # nn.Linear(10,32) -> ReLU -> nn.Linear(32,5)
PAD = 128                        # lane-dense width for matmul operands


def _round_up(n, m):
    return ((n + m - 1) // m) * m


def mlp_kernel(x_ref, w1_ref, b1_ref, w2_ref, b2_ref, o_ref):
    # [tile_b, 128] @ [128, 128] -> f32 accumulate on MXU
    h = jnp.dot(x_ref[...], w1_ref[...], preferred_element_type=jnp.float32)
    h = jnp.maximum(h + b1_ref[...], 0.0)                       # bias + ReLU on VPU (f32)
    out = jnp.dot(h, w2_ref[...], preferred_element_type=jnp.float32)
    out = out + b2_ref[...]
    # Store only the 5 real output columns (natural-width output, no padded writeback).
    o_ref[...] = out[:, :F_OUT].astype(o_ref.dtype)


def pad_params(w1, b1, w2, b2):
    """One-time zero-padding of parameters to 128-lane matmul operands.

    PyTorch stores Linear weight as [out, in]; we keep the transposed layout
    [in, out] so the kernel computes a plain x @ W.  Pads are exact zeros, so
    results match the unpadded math bit-for-bit in f32.
    """
    w1p = jnp.pad(w1, ((0, PAD - F_IN), (0, PAD - F_HID)))
    b1p = jnp.pad(b1.reshape(1, F_HID), ((0, 0), (0, PAD - F_HID)))
    w2p = jnp.pad(w2, ((0, PAD - F_HID), (0, PAD - F_OUT)))
    b2p = jnp.pad(b2.reshape(1, F_OUT), ((0, 0), (0, PAD - F_OUT)))
    return w1p, b1p, w2p, b2p


def toy_model_forward(x, w1p, b1p, w2p, b2p, *, tile_b=1024):
    """x: [B, 10]; padded params from pad_params() -> [B, 5]."""
    B = x.shape[0]
    dt = x.dtype

    # Lane-dense input: pad 10 -> 128 feature columns (exact zeros).
    xp = jnp.pad(x, ((0, 0), (0, PAD - F_IN)))

    # Batch tiling: tile rows are a multiple of 8 sublanes.
    tb = min(tile_b, _round_up(B, 8))
    Bp = _round_up(B, tb)
    if Bp != B:
        xp = jnp.pad(xp, ((0, Bp - B), (0, 0)))
    grid = (Bp // tb,)

    cost = pl.CostEstimate(
        flops=4 * Bp * PAD * PAD,                        # two [tb,128]x[128,128] matmuls per row
        transcendentals=0,
        bytes_accessed=(Bp * PAD + Bp * F_OUT + 2 * PAD * PAD + 2 * PAD) * xp.dtype.itemsize,
    )

    out = pl.pallas_call(
        mlp_kernel,
        out_shape=jax.ShapeDtypeStruct((Bp, F_OUT), dt),
        grid=grid,
        in_specs=[
            pl.BlockSpec((tb, PAD), lambda i: (i, 0)),    # x: streamed per batch tile
            pl.BlockSpec((PAD, PAD), lambda i: (0, 0)),   # w1: resident in VMEM
            pl.BlockSpec((1, PAD), lambda i: (0, 0)),     # b1: resident
            pl.BlockSpec((PAD, PAD), lambda i: (0, 0)),   # w2: resident
            pl.BlockSpec((1, PAD), lambda i: (0, 0)),     # b2: resident
        ],
        out_specs=pl.BlockSpec((tb, F_OUT), lambda i: (i, 0)),   # natural 5-wide output
        compiler_params=pltpu.CompilerParams(
            dimension_semantics=("parallel",),            # v7x: shard batch across 2 TCs
        ),
        cost_estimate=cost,
    )(xp, w1p, b1p, w2p, b2p)

    return out[:B] if Bp != B else out


def init_params(key):
    """Deterministic init matching nn.Linear(10,32) and nn.Linear(32,5)."""
    k1, k2, k3, k4 = jax.random.split(key, 4)
    lim1 = 1.0 / jnp.sqrt(float(F_IN))
    lim2 = 1.0 / jnp.sqrt(float(F_HID))
    w1 = jax.random.uniform(k1, (F_IN, F_HID), jnp.float32, -lim1, lim1)
    b1 = jax.random.uniform(k2, (F_HID,), jnp.float32, -lim1, lim1)
    w2 = jax.random.uniform(k3, (F_HID, F_OUT), jnp.float32, -lim2, lim2)
    b2 = jax.random.uniform(k4, (F_OUT,), jnp.float32, -lim2, lim2)
    return w1, b1, w2, b2


if __name__ == "__main__":
    key = jax.random.PRNGKey(0)
    kx, kp = jax.random.split(key)

    batch = 8
    x = jax.random.normal(kx, (batch, F_IN), jnp.float32)
    w1, b1, w2, b2 = init_params(kp)

    padded = pad_params(w1, b1, w2, b2)           # one-time parameter prep
    fwd = jax.jit(toy_model_forward)

    out = fwd(x, *padded)
    out = jax.block_until_ready(out)

    # Pure-JAX reference for sanity check.
    ref = jnp.maximum(x @ w1 + b1[None, :], 0.0) @ w2 + b2[None, :]
    assert out.shape == (batch, F_OUT), out.shape
    assert jnp.allclose(out, ref, atol=1e-5, rtol=1e-5), "mismatch vs reference"

    print("KERNEL_OK")
</pallas_src>

<mosaic_0001>
module attributes {stable_mosaic.version = 11 : i64} {
  func.func @mlp_kernel(%arg0: i32, %arg1: memref<8x128xf32, #tpu.memory_space<vmem>>, %arg2: memref<128x128xf32, #tpu.memory_space<vmem>>, %arg3: memref<1x128xf32, #tpu.memory_space<vmem>>, %arg4: memref<128x128xf32, #tpu.memory_space<vmem>>, %arg5: memref<1x128xf32, #tpu.memory_space<vmem>>, %arg6: memref<8x5xf32, #tpu.memory_space<vmem>>) attributes {dimension_semantics = [#tpu.dimension_semantics<parallel>], iteration_bounds = array<i64: 1>, scalar_prefetch = 0 : i64, scratch_operands = 0 : i64, tpu.core_type = #tpu.core_type<tc>, window_params = [{transform_indices = @transform_0, window_bounds = array<i64: 8, 128>}, {pipeline_mode = #tpu.pipeline_mode<synchronous>, transform_indices = @transform_1, window_bounds = array<i64: 128, 128>}, {pipeline_mode = #tpu.pipeline_mode<synchronous>, transform_indices = @transform_2, window_bounds = array<i64: 1, 128>}, {pipeline_mode = #tpu.pipeline_mode<synchronous>, transform_indices = @transform_3, window_bounds = array<i64: 128, 128>}, {pipeline_mode = #tpu.pipeline_mode<synchronous>, transform_indices = @transform_4, window_bounds = array<i64: 1, 128>}, {transform_indices = @transform_5, window_bounds = array<i64: 8, 5>}]} {
    %c0 = arith.constant 0 : index
    %c0_0 = arith.constant 0 : index
    %0 = vector.load %arg1[%c0, %c0_0] : memref<8x128xf32, #tpu.memory_space<vmem>>, vector<8x128xf32>
    %c0_1 = arith.constant 0 : index
    %c0_2 = arith.constant 0 : index
    %1 = vector.load %arg2[%c0_1, %c0_2] : memref<128x128xf32, #tpu.memory_space<vmem>>, vector<128x128xf32>
    %cst = arith.constant dense<0.000000e+00> : vector<8x128xf32>
    %2 = tpu.matmul %0, %1, %cst {dimension_numbers = #tpu.dot_dimension_numbers<[1], [0], [0], [1], [0, 0, 1, 1], [], []>} : vector<8x128xf32>, vector<128x128xf32>, vector<8x128xf32> -> vector<8x128xf32>
    %c0_3 = arith.constant 0 : index
    %c0_4 = arith.constant 0 : index
    %3 = vector.load %arg3[%c0_3, %c0_4] : memref<1x128xf32, #tpu.memory_space<vmem>>, vector<1x128xf32>
    %4 = vector.broadcast %3 : vector<1x128xf32> to vector<8x128xf32>
    %5 = arith.addf %2, %4 : vector<8x128xf32>
    %cst_5 = arith.constant 0.000000e+00 : f32
    %6 = vector.broadcast %cst_5 : f32 to vector<8x128xf32>
    %7 = arith.maximumf %5, %6 : vector<8x128xf32>
    %c0_6 = arith.constant 0 : index
    %c0_7 = arith.constant 0 : index
    %8 = vector.load %arg4[%c0_6, %c0_7] : memref<128x128xf32, #tpu.memory_space<vmem>>, vector<128x128xf32>
    %cst_8 = arith.constant dense<0.000000e+00> : vector<8x128xf32>
    %9 = tpu.matmul %7, %8, %cst_8 {dimension_numbers = #tpu.dot_dimension_numbers<[1], [0], [0], [1], [0, 0, 1, 1], [], []>} : vector<8x128xf32>, vector<128x128xf32>, vector<8x128xf32> -> vector<8x128xf32>
    %c0_9 = arith.constant 0 : index
    %c0_10 = arith.constant 0 : index
    %10 = vector.load %arg5[%c0_9, %c0_10] : memref<1x128xf32, #tpu.memory_space<vmem>>, vector<1x128xf32>
    %11 = vector.broadcast %10 : vector<1x128xf32> to vector<8x128xf32>
    %12 = arith.addf %9, %11 : vector<8x128xf32>
    %13 = vector.extract_strided_slice %12 {offsets = [0, 0], sizes = [8, 5], strides = [1, 1]} : vector<8x128xf32> to vector<8x5xf32>
    %c0_11 = arith.constant 0 : index
    %c0_12 = arith.constant 0 : index
    %14 = vector.load %arg6[%c0_11, %c0_12] : memref<8x5xf32, #tpu.memory_space<vmem>>, vector<8x5xf32>
    tpu.vector_store %arg6[%c0_11, %c0_12], %13 {strides = array<i32>} : memref<8x5xf32, #tpu.memory_space<vmem>>, vector<8x5xf32>,
    return
  }
  func.func @transform_0(%arg0: i32) -> (i32, i32) {
    %c0_i32 = arith.constant 0 : i32
    %c0_i32_0 = arith.constant 0 : i32
    return %arg0, %c0_i32 : i32, i32
  }
  func.func @transform_1(%arg0: i32) -> (i32, i32) {
    %c0_i32 = arith.constant 0 : i32
    %c0_i32_0 = arith.constant 0 : i32
    %c0_i32_1 = arith.constant 0 : i32
    return %c0_i32, %c0_i32_0 : i32, i32
  }
  func.func @transform_2(%arg0: i32) -> (i32, i32) {
    %c0_i32 = arith.constant 0 : i32
    %c0_i32_0 = arith.constant 0 : i32
    %c0_i32_1 = arith.constant 0 : i32
    return %c0_i32, %c0_i32_0 : i32, i32
  }
  func.func @transform_3(%arg0: i32) -> (i32, i32) {
    %c0_i32 = arith.constant 0 : i32
    %c0_i32_0 = arith.constant 0 : i32
    %c0_i32_1 = arith.constant 0 : i32
    return %c0_i32, %c0_i32_0 : i32, i32
  }
  func.func @transform_4(%arg0: i32) -> (i32, i32) {
    %c0_i32 = arith.constant 0 : i32
    %c0_i32_0 = arith.constant 0 : i32
    %c0_i32_1 = arith.constant 0 : i32
    return %c0_i32, %c0_i32_0 : i32, i32
  }
  func.func @transform_5(%arg0: i32) -> (i32, i32) {
    %c0_i32 = arith.constant 0 : i32
    %c0_i32_0 = arith.constant 0 : i32
    return %arg0, %c0_i32 : i32, i32
  }
}

</mosaic_0001>

<llo_original>
// kernel: toy_model_forward.1
$region0: #{toy_model_forward.1}
  #allocation0 [shape = 'u32[]', space=smem, size = 0x4, offset = 0x4, fixed_abs, tag = 'smem constant byte address 0x4 - core index']
  #allocation1 [shape = 'u32[72,128]{1,0:T(1,128)}', space=vmem, size = 0x9000, scoped, tag = 'internal scratch']
  %s0 = inlined_call_operand.vmem [shape: f32[8,128], index: 0, kind: input, shape index: {}]
  %s1 = inlined_call_operand.hbm [shape: f32[128,128], index: 1, kind: input, shape index: {}]
  %s2 = inlined_call_operand.vmem [shape: f32[1,128], index: 2, kind: input, shape index: {}]
  %s3 = inlined_call_operand.hbm [shape: f32[128,128], index: 3, kind: input, shape index: {}]
  %s4 = inlined_call_operand.vmem [shape: f32[1,128], index: 4, kind: input, shape index: {}]
  %s5 = inlined_call_operand.hbm [shape: f32[8,5], index: 5, kind: output, shape index: {}]
  %s6 = sld [smem:[#allocation0]]
  $region38: #{toy_model_forward.1} parent=0
    _
  %s8 = ssub.s32 1, %s6
  %s9 = scalar_select 0, %s8, %s6
  $region1: #{toy_model_forward.1} parent=0
    #allocation2 [shape = 'u8[65536]{0}', space=vmem, size = 0x10000, scoped, tag = 'input window, operand 1, single buffered']
    #allocation3 [shape = 's32[1]{0}', space=sflag, size = 0x4, scoped, tag = 'scoped memory for toy_model_forward.1']
    #allocation4 [shape = 's32[1]{0}', space=sflag, size = 0x4, scoped, tag = 'scoped memory for toy_model_forward.1']
    #allocation5 [shape = 'u8[65536]{0}', space=vmem, size = 0x10000, scoped, tag = 'input window, operand 3, single buffered']
    #allocation6 [shape = 's32[1]{0}', space=sflag, size = 0x4, scoped, tag = 'scoped memory for toy_model_forward.1']
    #allocation7 [shape = 'u8[4096]{0}', space=vmem, size = 0x1000, scoped, tag = 'output window, operand 0, single buffered']
    %10 = vsyncpa [#allocation3], 0
    %11 = vsyncpa [#allocation6], 0
    %12 = vsyncpa [#allocation4], 0
    // Predicated region
    $region2: #{toy_model_forward.1} parent=1 // pred_check
      _
    $region3: #{toy_model_forward.1} parent=1 // pred_check_branch
      %14 = sbr.rel (0) target = $region5
    $region4: #{toy_model_forward.1} parent=1 // pred_region
      _
    $region5: #{toy_model_forward.1} parent=1 // pred_fallthru
      _
    // Predicated region
    $region6: #{toy_model_forward.1} parent=1 // pred_check
      _
    $region7: #{toy_model_forward.1} parent=1 // pred_check_branch
      %16 = sbr.rel (0) target = $region9
    $region8: #{toy_model_forward.1} parent=1 // pred_region
      %18 = vsyncadd [#allocation3], 0
      %s19 = sshll.u32 %s1, 4
      %s20 = int_to_ptr.hbm [resolvable:$true] %s19
      %s21 = sshll.u32 [#allocation2], 4
      %s22 = int_to_ptr.vmem [resolvable:$true] %s21
      %27 = dma.hbm_to_vmem [thread:$0]  %s20, 2048, %s22, [#allocation3], 128, 128, 8
    $region9: #{toy_model_forward.1} parent=1 // pred_fallthru
      _
    // Predicated region
    $region10: #{toy_model_forward.1} parent=1 // pred_check
      _
    $region11: #{toy_model_forward.1} parent=1 // pred_check_branch
      %29 = sbr.rel (0) target = $region13
    $region12: #{toy_model_forward.1} parent=1 // pred_region
      _
    $region13: #{toy_model_forward.1} parent=1 // pred_fallthru
      _
    // Predicated region
    $region14: #{toy_model_forward.1} parent=1 // pred_check
      _
    $region15: #{toy_model_forward.1} parent=1 // pred_check_branch
      %31 = sbr.rel (0) target = $region17
    $region16: #{toy_model_forward.1} parent=1 // pred_region
      %33 = vsyncadd [#allocation6], 0
      %s34 = sshll.u32 %s3, 4
      %s35 = int_to_ptr.hbm [resolvable:$true] %s34
      %s36 = sshll.u32 [#allocation5], 4
      %s37 = int_to_ptr.vmem [resolvable:$true] %s36
      %42 = dma.hbm_to_vmem [thread:$0]  %s35, 2048, %s37, [#allocation6], 128, 128, 8
    $region17: #{toy_model_forward.1} parent=1 // pred_fallthru
      _
    // Predicated region
    $region18: #{toy_model_forward.1} parent=1 // pred_check
      _
    $region19: #{toy_model_forward.1} parent=1 // pred_check_branch
      %44 = sbr.rel (0) target = $region21
    $region20: #{toy_model_forward.1} parent=1 // pred_region
      _
    $region21: #{toy_model_forward.1} parent=1 // pred_fallthru
      _
    // Predicated region
    $region22: #{toy_model_forward.1} parent=1 // pred_check
      _
    $region23: #{toy_model_forward.1} parent=1 // pred_check_branch
      %46 = sbr.rel (0) target = $region25
    $region24: #{toy_model_forward.1} parent=1 // pred_region
      %48 = dma.done [#allocation3], 2048
    $region25: #{toy_model_forward.1} parent=1 // pred_fallthru
      _
    // Predicated region
    $region26: #{toy_model_forward.1} parent=1 // pred_check
      _
    $region27: #{toy_model_forward.1} parent=1 // pred_check_branch
      %50 = sbr.rel (0) target = $region29
    $region28: #{toy_model_forward.1} parent=1 // pred_region
      %52 = dma.done [#allocation6], 2048
    $region29: #{toy_model_forward.1} parent=1 // pred_fallthru
      _
    %v53 = vld [vmem:[%s0] sm:$0xff]
    %v54 = vld [vmem:[#allocation2] sm:$0xff]
    %v55 = vld [vmem:[#allocation2 + $0x8] sm:$0xff]
    %v56 = vld [vmem:[#allocation2 + $0x10] sm:$0xff]
    %v57 = vld [vmem:[#allocation2 + $0x18] sm:$0xff]
    %v58 = vld [vmem:[#allocation2 + $0x20] sm:$0xff]
    %v59 = vld [vmem:[#allocation2 + $0x28] sm:$0xff]
    %v60 = vld [vmem:[#allocation2 + $0x30] sm:$0xff]
    %v61 = vld [vmem:[#allocation2 + $0x38] sm:$0xff]
    %v62 = vld [vmem:[#allocation2 + $0x40] sm:$0xff]
    %v63 = vld [vmem:[#allocation2 + $0x48] sm:$0xff]
    %v64 = vld [vmem:[#allocation2 + $0x50] sm:$0xff]
    %v65 = vld [vmem:[#allocation2 + $0x58] sm:$0xff]
    %v66 = vld [vmem:[#allocation2 + $0x60] sm:$0xff]
    %v67 = vld [vmem:[#allocation2 + $0x68] sm:$0xff]
    %v68 = vld [vmem:[#allocation2 + $0x70] sm:$0xff]
    %v69 = vld [vmem:[#allocation2 + $0x78] sm:$0xff]
    %v70 = vld [vmem:[%s2] sm:$0x1]
    %v72 = vperm.slane %v70, 0
    %74 = vmatpush.msra.mxu0 %v69
    %75 = vmatpush.msra.mxu0 %v68
    %76 = vmatpush.msra.mxu0 %v67
    %77 = vmatpush.msra.mxu0 %v66
    %78 = vmatpush.msra.mxu0 %v65
    %79 = vmatpush.msra.mxu0 %v64
    %80 = vmatpush.msra.mxu0 %v63
    %81 = vmatpush.msra.mxu0 %v62
    %82 = vmatpush.msra.mxu0 %v61
    %83 = vmatpush.msra.mxu0 %v60
    %84 = vmatpush.msra.mxu0 %v59
    %85 = vmatpush.msra.mxu0 %v58
    %86 = vmatpush.msra.mxu0 %v57
    %87 = vmatpush.msra.mxu0 %v56
    %88 = vmatpush.msra.mxu0 %v55
    %89 = vmatpush.msra.mxu0 %v54
    %90 = vmatmul.f32.gmra.mxu0 %v53
    %v91 = vpop.f32.mrf.mxu0
    %v92 = vadd.f32 %v72, %v91
    %93 = vdwg.mxu0
    %v94 = vmax.f32 %v92, 0.0
    %v95 = vld [vmem:[#allocation5] sm:$0xff]
    %v96 = vld [vmem:[#allocation5 + $0x8] sm:$0xff]
    %v97 = vld [vmem:[#allocation5 + $0x10] sm:$0xff]
    %v98 = vld [vmem:[#allocation5 + $0x18] sm:$0xff]
    %v99 = vld [vmem:[#allocation5 + $0x20] sm:$0xff]
    %v100 = vld [vmem:[#allocation5 + $0x28] sm:$0xff]
    %v101 = vld [vmem:[#allocation5 + $0x30] sm:$0xff]
    %v102 = vld [vmem:[#allocation5 + $0x38] sm:$0xff]
    %v103 = vld [vmem:[#allocation5 + $0x40] sm:$0xff]
    %v104 = vld [vmem:[#allocation5 + $0x48] sm:$0xff]
    %v105 = vld [vmem:[#allocation5 + $0x50] sm:$0xff]
    %v106 = vld [vmem:[#allocation5 + $0x58] sm:$0xff]
    %v107 = vld [vmem:[#allocation5 + $0x60] sm:$0xff]
    %v108 = vld [vmem:[#allocation5 + $0x68] sm:$0xff]
    %v109 = vld [vmem:[#allocation5 + $0x70] sm:$0xff]
    %v110 = vld [vmem:[#allocation5 + $0x78] sm:$0xff]
    %v111 = vld [vmem:[%s4] sm:$0x1]
    %v113 = vperm.slane %v111, 0
    %115 = vmatpush.msra.mxu0 %v110
    %116 = vmatpush.msra.mxu0 %v109
    %117 = vmatpush.msra.mxu0 %v108
    %118 = vmatpush.msra.mxu0 %v107
    %119 = vmatpush.msra.mxu0 %v106
    %120 = vmatpush.msra.mxu0 %v105
    %121 = vmatpush.msra.mxu0 %v104
    %122 = vmatpush.msra.mxu0 %v103
    %123 = vmatpush.msra.mxu0 %v102
    %124 = vmatpush.msra.mxu0 %v101
    %125 = vmatpush.msra.mxu0 %v100
    %126 = vmatpush.msra.mxu0 %v99
    %127 = vmatpush.msra.mxu0 %v98
    %128 = vmatpush.msra.mxu0 %v97
    %129 = vmatpush.msra.mxu0 %v96
    %130 = vmatpush.msra.mxu0 %v95
    %131 = vmatmul.f32.gmra.mxu0 %v94
    %v132 = vpop.f32.mrf.mxu0
    %v133 = vadd.f32 %v113, %v132
    %134 = vdwg.mxu0
    %vm135 = vcmask 39936
    %136 = vst.msk [vmem:[#allocation7] sm:$0xff] %vm135, %v133
    // Predicated region
    $region30: #{toy_model_forward.1} parent=1 // pred_check
      _
    $region31: #{toy_model_forward.1} parent=1 // pred_check_branch
      %138 = sbr.rel (0) target = $region33
    $region32: #{toy_model_forward.1} parent=1 // pred_region
      %140 = vsyncadd [#allocation4], 0
      %s142 = sshll.u32 [#allocation7], 4
      %s143 = int_to_ptr.vmem [resolvable:$true] %s142
      %s144 = sshll.u32 %s5, 4
      %s145 = int_to_ptr.hbm [resolvable:$true] %s144
      %147 = dma.vmem_to_hbm [thread:$0]  %s143, 128, %s145, [#allocation4]
    $region33: #{toy_model_forward.1} parent=1 // pred_fallthru
      _
    // Predicated region
    $region34: #{toy_model_forward.1} parent=1 // pred_check
      _
    $region35: #{toy_model_forward.1} parent=1 // pred_check_branch
      %149 = sbr.rel (0) target = $region37
    $region36: #{toy_model_forward.1} parent=1 // pred_region
      %151 = dma.done [#allocation4], 128
    $region37: #{toy_model_forward.1} parent=1 // pred_fallthru
      _
    %152 = vsyncpa [#allocation3], 1
    %153 = vsyncpa [#allocation6], 1
    %154 = vsyncpa [#allocation4], 1

</llo_original>
